<compile_context>
chip_gen: v7x
topology: tpu7x:2x2x1
jax: 0.10.0
libtpu: 0.0.40
codegen_flags: <defaults>
</compile_context>

<pallas_src>
import functools

import jax
import jax.numpy as jnp
from jax import lax
from jax.experimental import pallas as pl
from jax.experimental.pallas import tpu as pltpu


def _agn_kernel(scale_ref, shift_ref, x_ref, gamma_ref, beta_ref, o_ref, *,
                num_groups, eps):
    """One grid step = `nb` whole batches, all groups.

    Refs:
      scale_ref, shift_ref : VMEM (nb, 1, 1)  per-batch adaptive params
      x_ref, o_ref         : VMEM (nb, C, HW) data slab
      gamma_ref, beta_ref  : VMEM (1, C, 1)   GroupNorm affine (resident)
    """
    nb, C, HW = x_ref.shape
    G = num_groups
    Cg = C // G
    inv_cnt = 1.0 / float(Cg * HW)

    x = x_ref[...].astype(jnp.float32)                       # (nb, C, HW)

    # --- single pass over the slab: per-channel sum & sum-of-squares -------
    ch_sum = jnp.sum(x, axis=-1, keepdims=True)              # (nb, C, 1)
    ch_sq = jnp.sum(x * x, axis=-1, keepdims=True)           # (nb, C, 1)

    # --- per-group stats, expanded back to per-channel vectors -------------
    # NOTE: single-pass var = E[x^2] - mean^2 in f32; fine for activations.
    ch_idx = lax.broadcasted_iota(jnp.int32, (1, C, 1), 1)   # channel index
    mean_c = jnp.zeros((nb, C, 1), jnp.float32)
    rstd_c = jnp.zeros((nb, C, 1), jnp.float32)
    for g in range(G):                                       # static unroll; G is small
        sl = slice(g * Cg, (g + 1) * Cg)
        g_sum = jnp.sum(ch_sum[:, sl, :], axis=1, keepdims=True)   # (nb,1,1)
        g_sq = jnp.sum(ch_sq[:, sl, :], axis=1, keepdims=True)     # (nb,1,1)
        mean_g = g_sum * inv_cnt
        var_g = g_sq * inv_cnt - mean_g * mean_g
        rstd_g = lax.rsqrt(var_g + eps)
        in_g = (ch_idx >= g * Cg) & (ch_idx < (g + 1) * Cg)        # (1,C,1)
        mean_c = jnp.where(in_g, mean_g, mean_c)
        rstd_c = jnp.where(in_g, rstd_g, rstd_c)

    # --- fold GroupNorm affine + adaptive scale/shift: out = x*A + B -------
    s = scale_ref[...].astype(jnp.float32)                   # (nb,1,1)
    t = shift_ref[...].astype(jnp.float32)                   # (nb,1,1)
    gamma = gamma_ref[...].astype(jnp.float32)               # (1,C,1)
    beta = beta_ref[...].astype(jnp.float32)                 # (1,C,1)
    gi = gamma * rstd_c                                      # (nb,C,1)
    a = gi * s
    b = (beta - mean_c * gi) * s + t
    o_ref[...] = (x * a + b).astype(o_ref.dtype)


def _pick_batches_per_block(n, per_batch_bytes, target_bytes):
    """Largest divisor of n whose block stays under target_bytes, while keeping
    at least 2 grid steps when n >= 2 (so both v7x TensorCores get work)."""
    nb = 1
    for d in range(1, n + 1):
        if n % d != 0:
            continue
        if d * per_batch_bytes > target_bytes:
            break
        if n >= 2 and (n // d) < 2:
            break
        nb = d
    return nb


def adaptive_group_norm(x, gamma, beta, scale, shift, *, num_groups, eps=1e-5,
                        target_block_bytes=1 << 20):
    """x: (N, C, H, W); gamma/beta: (C,); scale/shift: (N,)."""
    N, C, H, W = x.shape
    G = num_groups
    assert C % G == 0, "channels must be divisible by num_groups"
    HW = H * W

    x_r = x.reshape(N, C, HW)
    gamma_r = gamma.reshape(1, C, 1)
    beta_r = beta.reshape(1, C, 1)
    scale_r = scale.reshape(N, 1, 1)
    shift_r = shift.reshape(N, 1, 1)

    # Block several batches per grid step so the ~0.35 us/step pipeline
    # overhead is amortized while staying well inside scoped VMEM.
    # TODO(synk): for very large C*HW (v7x's 64 MiB VMEM) add an HW-tiled
    # two-pass variant (stats pass + normalize pass) instead of whole batches.
    per_batch_bytes = C * HW * 4 * 2          # f32 compute copies of in + out
    nb = _pick_batches_per_block(N, per_batch_bytes, target_block_bytes)
    grid = (N // nb,)

    out = pl.pallas_call(
        functools.partial(_agn_kernel, num_groups=G, eps=eps),
        grid=grid,
        in_specs=[
            pl.BlockSpec((nb, 1, 1), lambda i: (i, 0, 0)),        # scale
            pl.BlockSpec((nb, 1, 1), lambda i: (i, 0, 0)),        # shift
            pl.BlockSpec((nb, C, HW), lambda i: (i, 0, 0)),       # x slab
            pl.BlockSpec(memory_space=pltpu.MemorySpace.VMEM),    # gamma (resident)
            pl.BlockSpec(memory_space=pltpu.MemorySpace.VMEM),    # beta  (resident)
        ],
        out_specs=pl.BlockSpec((nb, C, HW), lambda i: (i, 0, 0)),
        out_shape=jax.ShapeDtypeStruct((N, C, HW), x.dtype),
        compiler_params=pltpu.CompilerParams(
            dimension_semantics=("parallel",),
            vmem_limit_bytes=64 * 1024 * 1024),
    )(scale_r, shift_r, x_r, gamma_r, beta_r)

    return out.reshape(N, C, H, W)


def _reference(x, gamma, beta, scale, shift, *, num_groups, eps=1e-5):
    """Pure-JAX reference matching torch.nn.GroupNorm + adaptive scale/shift."""
    N, C, H, W = x.shape
    G = num_groups
    xg = x.reshape(N, G, -1)
    mean = xg.mean(axis=-1, keepdims=True)
    var = ((xg - mean) ** 2).mean(axis=-1, keepdims=True)
    xn = ((xg - mean) / jnp.sqrt(var + eps)).reshape(N, C, H, W)
    y = xn * gamma.reshape(1, C, 1, 1) + beta.reshape(1, C, 1, 1)
    return y * scale.reshape(-1, 1, 1, 1) + shift.reshape(-1, 1, 1, 1)


if __name__ == "__main__":
    key = jax.random.PRNGKey(0)
    k_x, k_g, k_b, k_s, k_h = jax.random.split(key, 5)

    N, C, H, W = 2, 4, 16, 16
    num_groups = 2

    x = jax.random.normal(k_x, (N, C, H, W), dtype=jnp.float32)
    # Deterministic GroupNorm affine parameters (synthetic, not checkpoint).
    gamma = 1.0 + 0.1 * jax.random.normal(k_g, (C,), dtype=jnp.float32)
    beta = 0.1 * jax.random.normal(k_b, (C,), dtype=jnp.float32)
    # Adaptive per-batch scale / shift (what assign_adaptive_paramters would set).
    scale = 1.0 + 0.5 * jax.random.normal(k_s, (N,), dtype=jnp.float32)
    shift = 0.5 * jax.random.normal(k_h, (N,), dtype=jnp.float32)

    out = adaptive_group_norm(x, gamma, beta, scale, shift,
                              num_groups=num_groups, eps=1e-5)
    out = jax.block_until_ready(out)

    ref = _reference(x, gamma, beta, scale, shift, num_groups=num_groups, eps=1e-5)
    assert out.shape == (N, C, H, W)
    assert jnp.allclose(out, ref, atol=1e-5, rtol=1e-5), "mismatch vs reference"

    print("KERNEL_OK")
</pallas_src>

<mosaic_0001>
module attributes {stable_mosaic.version = 11 : i64} {
  func.func @_agn_kernel(%arg0: i32, %arg1: memref<1x1x1xf32, #tpu.memory_space<vmem>>, %arg2: memref<1x1x1xf32, #tpu.memory_space<vmem>>, %arg3: memref<1x4x256xf32, #tpu.memory_space<vmem>>, %arg4: memref<1x4x1xf32, #tpu.memory_space<vmem>>, %arg5: memref<1x4x1xf32, #tpu.memory_space<vmem>>, %arg6: memref<1x4x256xf32, #tpu.memory_space<vmem>>) attributes {dimension_semantics = [#tpu.dimension_semantics<parallel>], iteration_bounds = array<i64: 2>, scalar_prefetch = 0 : i64, scratch_operands = 0 : i64, tpu.core_type = #tpu.core_type<tc>, window_params = [{transform_indices = @transform_0, window_bounds = array<i64: 1, 1, 1>}, {transform_indices = @transform_1, window_bounds = array<i64: 1, 1, 1>}, {transform_indices = @transform_2, window_bounds = array<i64: 1, 4, 256>}, {pipeline_mode = #tpu.pipeline_mode<synchronous>, transform_indices = @transform_3, window_bounds = array<i64: 1, 4, 1>}, {pipeline_mode = #tpu.pipeline_mode<synchronous>, transform_indices = @transform_4, window_bounds = array<i64: 1, 4, 1>}, {transform_indices = @transform_5, window_bounds = array<i64: 1, 4, 256>}]} {
    %c0 = arith.constant 0 : index
    %c0_0 = arith.constant 0 : index
    %c0_1 = arith.constant 0 : index
    %0 = vector.load %arg3[%c0, %c0_0, %c0_1] : memref<1x4x256xf32, #tpu.memory_space<vmem>>, vector<1x4x256xf32>
    %cst = arith.constant dense<0.000000e+00> : vector<1x4xf32>
    %1 = vector.multi_reduction <add>, %0, %cst [2] : vector<1x4x256xf32> to vector<1x4xf32>
    %2 = vector.shape_cast %1 : vector<1x4xf32> to vector<1x4x1xf32>
    %3 = arith.mulf %0, %0 : vector<1x4x256xf32>
    %cst_2 = arith.constant dense<0.000000e+00> : vector<1x4xf32>
    %4 = vector.multi_reduction <add>, %3, %cst_2 [2] : vector<1x4x256xf32> to vector<1x4xf32>
    %5 = vector.shape_cast %4 : vector<1x4xf32> to vector<1x4x1xf32>
    %6 = tpu.iota {dimensions = array<i32: 1>} : vector<1x4x1xi32>
    %cst_3 = arith.constant 0.000000e+00 : f32
    %7 = vector.broadcast %cst_3 : f32 to vector<1x4x1xf32>
    %cst_4 = arith.constant 0.000000e+00 : f32
    %8 = vector.broadcast %cst_4 : f32 to vector<1x4x1xf32>
    %9 = vector.extract_strided_slice %2 {offsets = [0, 0, 0], sizes = [1, 2, 1], strides = [1, 1, 1]} : vector<1x4x1xf32> to vector<1x2x1xf32>
    %cst_5 = arith.constant dense<0.000000e+00> : vector<1x1xf32>
    %10 = vector.multi_reduction <add>, %9, %cst_5 [1] : vector<1x2x1xf32> to vector<1x1xf32>
    %11 = vector.shape_cast %10 : vector<1x1xf32> to vector<1x1x1xf32>
    %12 = vector.extract_strided_slice %5 {offsets = [0, 0, 0], sizes = [1, 2, 1], strides = [1, 1, 1]} : vector<1x4x1xf32> to vector<1x2x1xf32>
    %cst_6 = arith.constant dense<0.000000e+00> : vector<1x1xf32>
    %13 = vector.multi_reduction <add>, %12, %cst_6 [1] : vector<1x2x1xf32> to vector<1x1xf32>
    %14 = vector.shape_cast %13 : vector<1x1xf32> to vector<1x1x1xf32>
    %cst_7 = arith.constant 0.001953125 : f32
    %15 = vector.broadcast %cst_7 : f32 to vector<1x1x1xf32>
    %16 = arith.mulf %11, %15 : vector<1x1x1xf32>
    %cst_8 = arith.constant 0.001953125 : f32
    %17 = vector.broadcast %cst_8 : f32 to vector<1x1x1xf32>
    %18 = arith.mulf %14, %17 : vector<1x1x1xf32>
    %19 = arith.mulf %16, %16 : vector<1x1x1xf32>
    %20 = arith.subf %18, %19 : vector<1x1x1xf32>
    %cst_9 = arith.constant 9.99999974E-6 : f32
    %21 = vector.broadcast %cst_9 : f32 to vector<1x1x1xf32>
    %22 = arith.addf %20, %21 : vector<1x1x1xf32>
    %23 = math.rsqrt %22 : vector<1x1x1xf32>
    %c0_i32 = arith.constant 0 : i32
    %24 = vector.broadcast %c0_i32 : i32 to vector<1x4x1xi32>
    %25 = arith.cmpi sge, %6, %24 : vector<1x4x1xi32>
    %c2_i32 = arith.constant 2 : i32
    %26 = vector.broadcast %c2_i32 : i32 to vector<1x4x1xi32>
    %27 = arith.cmpi slt, %6, %26 : vector<1x4x1xi32>
    %28 = arith.andi %25, %27 : vector<1x4x1xi1>
    %29 = vector.shape_cast %16 : vector<1x1x1xf32> to vector<1x1x1xf32>
    %30 = vector.broadcast %29 : vector<1x1x1xf32> to vector<1x4x1xf32>
    %31 = arith.select %28, %30, %7 : vector<1x4x1xi1>, vector<1x4x1xf32>
    %32 = vector.shape_cast %23 : vector<1x1x1xf32> to vector<1x1x1xf32>
    %33 = vector.broadcast %32 : vector<1x1x1xf32> to vector<1x4x1xf32>
    %34 = arith.select %28, %33, %8 : vector<1x4x1xi1>, vector<1x4x1xf32>
    %35 = vector.extract_strided_slice %2 {offsets = [0, 2, 0], sizes = [1, 2, 1], strides = [1, 1, 1]} : vector<1x4x1xf32> to vector<1x2x1xf32>
    %cst_10 = arith.constant dense<0.000000e+00> : vector<1x1xf32>
    %36 = vector.multi_reduction <add>, %35, %cst_10 [1] : vector<1x2x1xf32> to vector<1x1xf32>
    %37 = vector.shape_cast %36 : vector<1x1xf32> to vector<1x1x1xf32>
    %38 = vector.extract_strided_slice %5 {offsets = [0, 2, 0], sizes = [1, 2, 1], strides = [1, 1, 1]} : vector<1x4x1xf32> to vector<1x2x1xf32>
    %cst_11 = arith.constant dense<0.000000e+00> : vector<1x1xf32>
    %39 = vector.multi_reduction <add>, %38, %cst_11 [1] : vector<1x2x1xf32> to vector<1x1xf32>
    %40 = vector.shape_cast %39 : vector<1x1xf32> to vector<1x1x1xf32>
    %cst_12 = arith.constant 0.001953125 : f32
    %41 = vector.broadcast %cst_12 : f32 to vector<1x1x1xf32>
    %42 = arith.mulf %37, %41 : vector<1x1x1xf32>
    %cst_13 = arith.constant 0.001953125 : f32
    %43 = vector.broadcast %cst_13 : f32 to vector<1x1x1xf32>
    %44 = arith.mulf %40, %43 : vector<1x1x1xf32>
    %45 = arith.mulf %42, %42 : vector<1x1x1xf32>
    %46 = arith.subf %44, %45 : vector<1x1x1xf32>
    %cst_14 = arith.constant 9.99999974E-6 : f32
    %47 = vector.broadcast %cst_14 : f32 to vector<1x1x1xf32>
    %48 = arith.addf %46, %47 : vector<1x1x1xf32>
    %49 = math.rsqrt %48 : vector<1x1x1xf32>
    %c2_i32_15 = arith.constant 2 : i32
    %50 = vector.broadcast %c2_i32_15 : i32 to vector<1x4x1xi32>
    %51 = arith.cmpi sge, %6, %50 : vector<1x4x1xi32>
    %c4_i32 = arith.constant 4 : i32
    %52 = vector.broadcast %c4_i32 : i32 to vector<1x4x1xi32>
    %53 = arith.cmpi slt, %6, %52 : vector<1x4x1xi32>
    %54 = arith.andi %51, %53 : vector<1x4x1xi1>
    %55 = vector.shape_cast %42 : vector<1x1x1xf32> to vector<1x1x1xf32>
    %56 = vector.broadcast %55 : vector<1x1x1xf32> to vector<1x4x1xf32>
    %57 = arith.select %54, %56, %31 : vector<1x4x1xi1>, vector<1x4x1xf32>
    %58 = vector.shape_cast %49 : vector<1x1x1xf32> to vector<1x1x1xf32>
    %59 = vector.broadcast %58 : vector<1x1x1xf32> to vector<1x4x1xf32>
    %60 = arith.select %54, %59, %34 : vector<1x4x1xi1>, vector<1x4x1xf32>
    %c0_16 = arith.constant 0 : index
    %c0_17 = arith.constant 0 : index
    %c0_18 = arith.constant 0 : index
    %61 = vector.load %arg1[%c0_16, %c0_17, %c0_18] : memref<1x1x1xf32, #tpu.memory_space<vmem>>, vector<1x1x1xf32>
    %c0_19 = arith.constant 0 : index
    %c0_20 = arith.constant 0 : index
    %c0_21 = arith.constant 0 : index
    %62 = vector.load %arg2[%c0_19, %c0_20, %c0_21] : memref<1x1x1xf32, #tpu.memory_space<vmem>>, vector<1x1x1xf32>
    %c0_22 = arith.constant 0 : index
    %c0_23 = arith.constant 0 : index
    %c0_24 = arith.constant 0 : index
    %63 = vector.load %arg4[%c0_22, %c0_23, %c0_24] : memref<1x4x1xf32, #tpu.memory_space<vmem>>, vector<1x4x1xf32>
    %c0_25 = arith.constant 0 : index
    %c0_26 = arith.constant 0 : index
    %c0_27 = arith.constant 0 : index
    %64 = vector.load %arg5[%c0_25, %c0_26, %c0_27] : memref<1x4x1xf32, #tpu.memory_space<vmem>>, vector<1x4x1xf32>
    %65 = arith.mulf %63, %60 : vector<1x4x1xf32>
    %66 = vector.broadcast %61 : vector<1x1x1xf32> to vector<1x4x1xf32>
    %67 = arith.mulf %65, %66 : vector<1x4x1xf32>
    %68 = arith.mulf %57, %65 : vector<1x4x1xf32>
    %69 = arith.subf %64, %68 : vector<1x4x1xf32>
    %70 = vector.broadcast %61 : vector<1x1x1xf32> to vector<1x4x1xf32>
    %71 = arith.mulf %69, %70 : vector<1x4x1xf32>
    %72 = vector.broadcast %62 : vector<1x1x1xf32> to vector<1x4x1xf32>
    %73 = arith.addf %71, %72 : vector<1x4x1xf32>
    %74 = vector.broadcast %67 : vector<1x4x1xf32> to vector<1x4x256xf32>
    %75 = arith.mulf %0, %74 : vector<1x4x256xf32>
    %76 = vector.broadcast %73 : vector<1x4x1xf32> to vector<1x4x256xf32>
    %77 = arith.addf %75, %76 : vector<1x4x256xf32>
    %c0_28 = arith.constant 0 : index
    %c0_29 = arith.constant 0 : index
    %c0_30 = arith.constant 0 : index
    %78 = vector.load %arg6[%c0_28, %c0_29, %c0_30] : memref<1x4x256xf32, #tpu.memory_space<vmem>>, vector<1x4x256xf32>
    tpu.vector_store %arg6[%c0_28, %c0_29, %c0_30], %77 {strides = array<i32>} : memref<1x4x256xf32, #tpu.memory_space<vmem>>, vector<1x4x256xf32>,
    return
  }
  func.func @transform_0(%arg0: i32) -> (i32, i32, i32) {
    %c0_i32 = arith.constant 0 : i32
    %c0_i32_0 = arith.constant 0 : i32
    %c0_i32_1 = arith.constant 0 : i32
    return %arg0, %c0_i32, %c0_i32_0 : i32, i32, i32
  }
  func.func @transform_1(%arg0: i32) -> (i32, i32, i32) {
    %c0_i32 = arith.constant 0 : i32
    %c0_i32_0 = arith.constant 0 : i32
    %c0_i32_1 = arith.constant 0 : i32
    return %arg0, %c0_i32, %c0_i32_0 : i32, i32, i32
  }
  func.func @transform_2(%arg0: i32) -> (i32, i32, i32) {
    %c0_i32 = arith.constant 0 : i32
    %c0_i32_0 = arith.constant 0 : i32
    %c0_i32_1 = arith.constant 0 : i32
    return %arg0, %c0_i32, %c0_i32_0 : i32, i32, i32
  }
  func.func @transform_3(%arg0: i32) -> (i32, i32, i32) {
    %c0_i32 = arith.constant 0 : i32
    %c0_i32_0 = arith.constant 0 : i32
    %c0_i32_1 = arith.constant 0 : i32
    %c0_i32_2 = arith.constant 0 : i32
    return %c0_i32, %c0_i32_0, %c0_i32_1 : i32, i32, i32
  }
  func.func @transform_4(%arg0: i32) -> (i32, i32, i32) {
    %c0_i32 = arith.constant 0 : i32
    %c0_i32_0 = arith.constant 0 : i32
    %c0_i32_1 = arith.constant 0 : i32
    %c0_i32_2 = arith.constant 0 : i32
    return %c0_i32, %c0_i32_0, %c0_i32_1 : i32, i32, i32
  }
  func.func @transform_5(%arg0: i32) -> (i32, i32, i32) {
    %c0_i32 = arith.constant 0 : i32
    %c0_i32_0 = arith.constant 0 : i32
    %c0_i32_1 = arith.constant 0 : i32
    return %arg0, %c0_i32, %c0_i32_0 : i32, i32, i32
  }
}

</mosaic_0001>

<llo_original>
// kernel: tpu_custom_call.1
$region0: #{tpu_custom_call.1}
  #allocation0 [shape = 'u32[]', space=smem, size = 0x4, offset = 0x4, fixed_abs, tag = 'smem constant byte address 0x4 - core index']
  #allocation1 [shape = 'u32[144,128]{1,0:T(1,128)}', space=vmem, size = 0x12000, scoped, tag = 'internal scratch']
  %s0 = inlined_call_operand.hbm [shape: f32[2,1,1], index: 0, kind: input, shape index: {}]
  %s1 = inlined_call_operand.hbm [shape: f32[2,1,1], index: 1, kind: input, shape index: {}]
  %s2 = inlined_call_operand.hbm [shape: f32[2,4,256], index: 2, kind: input, shape index: {}]
  %s3 = inlined_call_operand.hbm [shape: f32[1,4,1], index: 3, kind: input, shape index: {}]
  %s4 = inlined_call_operand.hbm [shape: f32[1,4,1], index: 4, kind: input, shape index: {}]
  %s5 = inlined_call_operand.hbm [shape: f32[2,4,256], index: 5, kind: output, shape index: {}]
  %s6 = sld [smem:[#allocation0]]
  $region73: #{tpu_custom_call.1} parent=0
    _
  %s8 = ssub.s32 1, %s6
  %s9 = scalar_select 0, %s8, %s6
  $region1: #{tpu_custom_call.1} parent=0
    #allocation2 [shape = 'u8[1024]{0}', space=vmem, size = 0x400, scoped, tag = 'input window, operand 0']
    #allocation3 [shape = 's32[2]{0}', space=sflag, size = 0x8, scoped, tag = 'scoped memory for tpu_custom_call.1']
    #allocation4 [shape = 's32[2]{0}', space=sflag, size = 0x8, scoped, tag = 'scoped memory for tpu_custom_call.1']
    #allocation5 [shape = 'u8[1024]{0}', space=vmem, size = 0x400, scoped, tag = 'input window, operand 1']
    #allocation6 [shape = 's32[2]{0}', space=sflag, size = 0x8, scoped, tag = 'scoped memory for tpu_custom_call.1']
    #allocation7 [shape = 'u8[8192]{0}', space=vmem, size = 0x2000, scoped, tag = 'input window, operand 2']
    #allocation8 [shape = 'u8[2048]{0}', space=vmem, size = 0x800, scoped, tag = 'input window, operand 3, single buffered']
    #allocation9 [shape = 's32[1]{0}', space=sflag, size = 0x4, scoped, tag = 'scoped memory for tpu_custom_call.1']
    #allocation10 [shape = 'u8[2048]{0}', space=vmem, size = 0x800, scoped, tag = 'input window, operand 4, single buffered']
    #allocation11 [shape = 'u8[8192]{0}', space=vmem, size = 0x2000, scoped, tag = 'output window, operand 0']
    %10 = vsyncpa [#allocation3], 0
    %s11 = scalar_lea.sflag [#allocation3], 1
    %12 = vsyncpa %s11, 0
    %13 = vsyncpa [#allocation6], 0
    %s14 = scalar_lea.sflag [#allocation6], 1
    %15 = vsyncpa %s14, 0
    %16 = vsyncpa [#allocation9], 0
    %17 = vsyncpa [#allocation4], 0
    %s18 = scalar_lea.sflag [#allocation4], 1
    %19 = vsyncpa %s18, 0
    loop: start=0, step=1, limit=4
    $region2: #{tpu_custom_call.1} parent=1 // loop_pre_header
      _
    $region3: #{tpu_custom_call.1} parent=1 // loop_header
      %s21 = sphi 0, %s25
      %p22 = scmp.ge.s32.totalorder %s21, 4
      %s31 = sphi 0, %s33
      %s34 = sphi 0, %s31
      %s35 = sphi 0, %s34
      %s51 = sphi 0, %s35
      %s57 = sphi 0, %s59
      %s60 = sphi 0, %s57
      %s61 = sphi 0, %s60
      %s77 = sphi 0, %s61
      %s83 = sphi 0, %s85
      %s86 = sphi 0, %s83
      %s87 = sphi 0, %s86
      %s103 = sphi 0, %s87
      %s107 = sphi 0, %s107
      %s109 = sphi 0, %s107
      %s110 = sphi 0, %s109
      %s124 = sphi 0, %s110
      %s128 = sphi 0, %s128
      %s130 = sphi 0, %s128
      %s131 = sphi 0, %s130
      %s145 = sphi 0, %s131
      %s151 = sphi 0, %s153
      %s154 = sphi 0, %s151
      %s155 = sphi 0, %s154
      %s171 = sphi 0, %s155
    $region4: #{tpu_custom_call.1} parent=1 // loop_header_branch
      %24 = sbr.rel (%p22) target = $region8
    $region5: #{tpu_custom_call.1} parent=1 // loop_body
      %s26 = ssub.s32 %s21, 1
      %s27 = ssub.s32 %s21, 2
      %s28 = sadd.s32 %s21, 1
      %s29 = ssub.s32 %s21, %s28
      %p30 = scmp.eq.s32.totalorder %s29, 0
      %s32 = sadd.s32 %s31, 1
      %s33 = scalar_select %p30, %s31, %s32
      %p36 = pneg %p30
      %p37 = scmp.eq.s32.totalorder %s21, 1
      %p38 = por %p36, %p37
      %p39 = scmp.ne.s32.totalorder %s31, %s34
      %p40 = scmp.eq.s32.totalorder %s21, 0
      %p41 = por %p39, %p40
      %p42 = scmp.ne.s32.totalorder %s31, %s34
      %p43 = scmp.eq.s32.totalorder %s26, 1
      %p44 = por %p42, %p43
      %p45 = scmp.ne.s32.totalorder %s34, %s35
      %p46 = scmp.eq.s32.totalorder %s26, 0
      %p47 = por %p45, %p46
      %p48 = scmp.ne.s32.totalorder %s34, %s35
      %p49 = scmp.eq.s32.totalorder %s27, 1
      %p50 = por %p48, %p49
      %p52 = scmp.ne.s32.totalorder %s35, %s51
      %p53 = scmp.eq.s32.totalorder %s27, 0
      %p54 = por %p52, %p53
      %s55 = ssub.s32 %s21, %s28
      %p56 = scmp.eq.s32.totalorder %s55, 0
      %s58 = sadd.s32 %s57, 1
      %s59 = scalar_select %p56, %s57, %s58
      %p62 = pneg %p56
      %p63 = scmp.eq.s32.totalorder %s21, 1
      %p64 = por %p62, %p63
      %p65 = scmp.ne.s32.totalorder %s57, %s60
      %p66 = scmp.eq.s32.totalorder %s21, 0
      %p67 = por %p65, %p66
      %p68 = scmp.ne.s32.totalorder %s57, %s60
      %p69 = scmp.eq.s32.totalorder %s26, 1
      %p70 = por %p68, %p69
      %p71 = scmp.ne.s32.totalorder %s60, %s61
      %p72 = scmp.eq.s32.totalorder %s26, 0
      %p73 = por %p71, %p72
      %p74 = scmp.ne.s32.totalorder %s60, %s61
      %p75 = scmp.eq.s32.totalorder %s27, 1
      %p76 = por %p74, %p75
      %p78 = scmp.ne.s32.totalorder %s61, %s77
      %p79 = scmp.eq.s32.totalorder %s27, 0
      %p80 = por %p78, %p79
      %s81 = ssub.s32 %s21, %s28
      %p82 = scmp.eq.s32.totalorder %s81, 0
      %s84 = sadd.s32 %s83, 1
      %s85 = scalar_select %p82, %s83, %s84
      %p88 = pneg %p82
      %p89 = scmp.eq.s32.totalorder %s21, 1
      %p90 = por %p88, %p89
      %p91 = scmp.ne.s32.totalorder %s83, %s86
      %p92 = scmp.eq.s32.totalorder %s21, 0
      %p93 = por %p91, %p92
      %p94 = scmp.ne.s32.totalorder %s83, %s86
      %p95 = scmp.eq.s32.totalorder %s26, 1
      %p96 = por %p94, %p95
      %p97 = scmp.ne.s32.totalorder %s86, %s87
      %p98 = scmp.eq.s32.totalorder %s26, 0
      %p99 = por %p97, %p98
      %p100 = scmp.ne.s32.totalorder %s86, %s87
      %p101 = scmp.eq.s32.totalorder %s27, 1
      %p102 = por %p100, %p101
      %p104 = scmp.ne.s32.totalorder %s87, %s103
      %p105 = scmp.eq.s32.totalorder %s27, 0
      %p106 = por %p104, %p105
      %s108 = sadd.s32 %s107, 1
      %p111 = scmp.eq.s32.totalorder %s21, 1
      %p112 = scmp.ne.s32.totalorder %s107, %s109
      %p113 = scmp.eq.s32.totalorder %s21, 0
      %p114 = por %p112, %p113
      %p115 = scmp.ne.s32.totalorder %s107, %s109
      %p116 = scmp.eq.s32.totalorder %s26, 1
      %p117 = por %p115, %p116
      %p118 = scmp.ne.s32.totalorder %s109, %s110
      %p119 = scmp.eq.s32.totalorder %s26, 0
      %p120 = por %p118, %p119
      %p121 = scmp.ne.s32.totalorder %s109, %s110
      %p122 = scmp.eq.s32.totalorder %s27, 1
      %p123 = por %p121, %p122
      %p125 = scmp.ne.s32.totalorder %s110, %s124
      %p126 = scmp.eq.s32.totalorder %s27, 0
      %p127 = por %p125, %p126
      %s129 = sadd.s32 %s128, 1
      %p132 = scmp.eq.s32.totalorder %s21, 1
      %p133 = scmp.ne.s32.totalorder %s128, %s130
      %p134 = scmp.eq.s32.totalorder %s21, 0
      %p135 = por %p133, %p134
      %p136 = scmp.ne.s32.totalorder %s128, %s130
      %p137 = scmp.eq.s32.totalorder %s26, 1
      %p138 = por %p136, %p137
      %p139 = scmp.ne.s32.totalorder %s130, %s131
      %p140 = scmp.eq.s32.totalorder %s26, 0
      %p141 = por %p139, %p140
      %p142 = scmp.ne.s32.totalorder %s130, %s131
      %p143 = scmp.eq.s32.totalorder %s27, 1
      %p144 = por %p142, %p143
      %p146 = scmp.ne.s32.totalorder %s131, %s145
      %p147 = scmp.eq.s32.totalorder %s27, 0
      %p148 = por %p146, %p147
      %s149 = ssub.s32 %s21, %s28
      %p150 = scmp.eq.s32.totalorder %s149, 0
      %s152 = sadd.s32 %s151, 1
      %s153 = scalar_select %p150, %s151, %s152
      %p156 = pneg %p150
      %p157 = scmp.eq.s32.totalorder %s21, 1
      %p158 = por %p156, %p157
      %p159 = scmp.ne.s32.totalorder %s151, %s154
      %p160 = scmp.eq.s32.totalorder %s21, 0
      %p161 = por %p159, %p160
      %p162 = scmp.ne.s32.totalorder %s151, %s154
      %p163 = scmp.eq.s32.totalorder %s26, 1
      %p164 = por %p162, %p163
      %p165 = scmp.ne.s32.totalorder %s154, %s155
      %p166 = scmp.eq.s32.totalorder %s26, 0
      %p167 = por %p165, %p166
      %p168 = scmp.ne.s32.totalorder %s154, %s155
      %p169 = scmp.eq.s32.totalorder %s27, 1
      %p170 = por %p168, %p169
      %p172 = scmp.ne.s32.totalorder %s155, %s171
      %p173 = scmp.eq.s32.totalorder %s27, 0
      %p174 = por %p172, %p173
      %p175 = scmp.le.s32.totalorder 1, %s21
      %p176 = scmp.lt.s32.totalorder %s21, 3
      %p177 = pnand %p175, %p176
      %p178 = pneg %p177
      // Predicated region
      $region9: #{tpu_custom_call.1} parent=5 // pred_check
        _
      $region10: #{tpu_custom_call.1} parent=5 // pred_check_branch
        %180 = sbr.rel (%p177) target = $region12
      $region11: #{tpu_custom_call.1} parent=5 // pred_region
        %s181 = ssub.s32 %s21, 1
        // Predicated region
        $region13: #{tpu_custom_call.1} parent=11 // pred_check
          %p182 = pneg %p120
        $region14: #{tpu_custom_call.1} parent=11 // pred_check_branch
          %184 = sbr.rel (%p182) target = $region16
        $region15: #{tpu_custom_call.1} parent=11 // pred_region
          %s186 = ssub.s32 64, 64
          %187 = vsyncadd [#allocation9], %s186
          %s189 = sshll.u32 [#allocation8], 4
          %s190 = int_to_ptr.vmem [resolvable:$true] %s189
          %192 = dma.hbm_to_vmem [thread:$0]  %s3, 64, %s190, [#allocation9]
        $region16: #{tpu_custom_call.1} parent=11 // pred_fallthru
          _
        // Predicated region
        $region17: #{tpu_custom_call.1} parent=11 // pred_check
          %p193 = pneg %p141
        $region18: #{tpu_custom_call.1} parent=11 // pred_check_branch
          %195 = sbr.rel (%p193) target = $region20
        $region19: #{tpu_custom_call.1} parent=11 // pred_region
          %s197 = ssub.s32 64, 64
          %198 = vsyncadd [#allocation9], %s197
          %s200 = sshll.u32 [#allocation10], 4
          %s201 = int_to_ptr.vmem [resolvable:$true] %s200
          %203 = dma.hbm_to_vmem [thread:$0]  %s4, 64, %s201, [#allocation9]
        $region20: #{tpu_custom_call.1} parent=11 // pred_fallthru
          _
      $region12: #{tpu_custom_call.1} parent=5 // pred_fallthru
        _
      %p204 = scmp.lt.s32.totalorder %s21, 2
      // Predicated region
      $region21: #{tpu_custom_call.1} parent=5 // pred_check
        %p205 = pneg %p204
      $region22: #{tpu_custom_call.1} parent=5 // pred_check_branch
        %207 = sbr.rel (%p205) target = $region24
      $region23: #{tpu_custom_call.1} parent=5 // pred_region
        // Predicated region
        $region25: #{tpu_custom_call.1} parent=23 // pred_check
          %p208 = pneg %p41
        $region26: #{tpu_custom_call.1} parent=23 // pred_check_branch
          %210 = sbr.rel (%p208) target = $region28
        $region27: #{tpu_custom_call.1} parent=23 // pred_region
          %s211 = sand.u32 %s31, 1
          %s212 = scalar_lea.sflag [#allocation3], %s211
          %s213 = sand.u32 %s31, 1
          %s214 = scalar_lea.vmem [#allocation2], %s213
          %s216 = ssub.s32 16, 16
          %217 = vsyncadd %s212, %s216
          %s218 = smul.addr %s21, 16
          %s219 = scalar_lea.hbm %s0, %s218
          %s221 = sshll.u32 %s214, 4
          %s222 = int_to_ptr.vmem [resolvable:$true] %s221
          %224 = dma.hbm_to_vmem [thread:$0]  %s219, 16, %s222, %s212
        $region28: #{tpu_custom_call.1} parent=23 // pred_fallthru
          _
        // Predicated region
        $region29: #{tpu_custom_call.1} parent=23 // pred_check
          %p225 = pneg %p67
        $region30: #{tpu_custom_call.1} parent=23 // pred_check_branch
          %227 = sbr.rel (%p225) target = $region32
        $region31: #{tpu_custom_call.1} parent=23 // pred_region
          %s228 = sand.u32 %s21, 1
          %s229 = scalar_lea.sflag [#allocation6], %s228
          %s230 = sand.u32 %s57, 1
          %s231 = scalar_lea.vmem [#allocation5], %s230
          %s233 = ssub.s32 16, 16
          %234 = vsyncadd %s229, %s233
          %s235 = smul.addr %s21, 16
          %s236 = scalar_lea.hbm %s1, %s235
          %s238 = sshll.u32 %s231, 4
          %s239 = int_to_ptr.vmem [resolvable:$true] %s238
          %241 = dma.hbm_to_vmem [thread:$0]  %s236, 16, %s239, %s229
        $region32: #{tpu_custom_call.1} parent=23 // pred_fallthru
          _
        // Predicated region
        $region33: #{tpu_custom_call.1} parent=23 // pred_check
          %p242 = pneg %p93
        $region34: #{tpu_custom_call.1} parent=23 // pred_check_branch
          %244 = sbr.rel (%p242) target = $region36
        $region35: #{tpu_custom_call.1} parent=23 // pred_region
          %s245 = sand.u32 %s21, 1
          %s246 = scalar_lea.sflag [#allocation6], %s245
          %s247 = sand.u32 %s83, 1
          %s248 = smul.addr %s247, 8
          %s249 = scalar_lea.vmem [#allocation7], %s248
          %s251 = ssub.s32 128, 128
          %252 = vsyncadd %s246, %s251
          %s253 = smul.addr %s21, 2
          %s254 = smul.addr %s253, 64
          %s255 = scalar_lea.hbm %s2, %s254
          %s257 = sshll.u32 %s249, 4
          %s258 = int_to_ptr.vmem [resolvable:$true] %s257
          %260 = dma.hbm_to_vmem [thread:$0]  %s255, 128, %s258, %s246
        $region36: #{tpu_custom_call.1} parent=23 // pred_fallthru
          _
      $region24: #{tpu_custom_call.1} parent=5 // pred_fallthru
        _
      %p261 = scmp.le.s32.totalorder 1, %s21
      %p262 = scmp.lt.s32.totalorder %s21, 3
      %p263 = pnand %p261, %p262
      %p264 = pneg %p263
      // Predicated region
      $region37: #{tpu_custom_call.1} parent=5 // pred_check
        _
      $region38: #{tpu_custom_call.1} parent=5 // pred_check_branch
        %266 = sbr.rel (%p263) target = $region40
      $region39: #{tpu_custom_call.1} parent=5 // pred_region
        %s267 = ssub.s32 %s21, 1
        %s268 = sand.u32 %s34, 1
        %s269 = scalar_lea.sflag [#allocation3], %s268
        %s270 = sand.u32 %s34, 1
        %s271 = scalar_lea.vmem [#allocation2], %s270
        // Predicated region
        $region41: #{tpu_custom_call.1} parent=39 // pred_check
          %p272 = pneg %p47
        $region42: #{tpu_custom_call.1} parent=39 // pred_check_branch
          %274 = sbr.rel (%p272) target = $region44
        $region43: #{tpu_custom_call.1} parent=39 // pred_region
          %275 = dma.done %s269, 16
        $region44: #{tpu_custom_call.1} parent=39 // pred_fallthru
          _
        %s276 = sand.u32 %s26, 1
        %s277 = scalar_lea.sflag [#allocation6], %s276
        %s278 = sand.u32 %s60, 1
        %s279 = scalar_lea.vmem [#allocation5], %s278
        // Predicated region
        $region45: #{tpu_custom_call.1} parent=39 // pred_check
          %p280 = pneg %p73
        $region46: #{tpu_custom_call.1} parent=39 // pred_check_branch
          %282 = sbr.rel (%p280) target = $region48
        $region47: #{tpu_custom_call.1} parent=39 // pred_region
          %283 = dma.done %s277, 16
        $region48: #{tpu_custom_call.1} parent=39 // pred_fallthru
          _
        %s284 = sand.u32 %s26, 1
        %s285 = scalar_lea.sflag [#allocation6], %s284
        %s286 = sand.u32 %s86, 1
        %s287 = smul.addr %s286, 8
        %s288 = scalar_lea.vmem [#allocation7], %s287
        // Predicated region
        $region49: #{tpu_custom_call.1} parent=39 // pred_check
          %p289 = pneg %p99
        $region50: #{tpu_custom_call.1} parent=39 // pred_check_branch
          %291 = sbr.rel (%p289) target = $region52
        $region51: #{tpu_custom_call.1} parent=39 // pred_region
          %292 = dma.done %s285, 128
        $region52: #{tpu_custom_call.1} parent=39 // pred_fallthru
          _
        // Predicated region
        $region53: #{tpu_custom_call.1} parent=39 // pred_check
          %p293 = pneg %p120
        $region54: #{tpu_custom_call.1} parent=39 // pred_check_branch
          %295 = sbr.rel (%p293) target = $region56
        $region55: #{tpu_custom_call.1} parent=39 // pred_region
          %296 = dma.done [#allocation9], 64
        $region56: #{tpu_custom_call.1} parent=39 // pred_fallthru
          _
        // Predicated region
        $region57: #{tpu_custom_call.1} parent=39 // pred_check
          %p297 = pneg %p141
        $region58: #{tpu_custom_call.1} parent=39 // pred_check_branch
          %299 = sbr.rel (%p297) target = $region60
        $region59: #{tpu_custom_call.1} parent=39 // pred_region
          %300 = dma.done [#allocation9], 64
        $region60: #{tpu_custom_call.1} parent=39 // pred_fallthru
          _
        %s301 = sand.u32 %s34, 1
        %s302 = scalar_lea.sflag [#allocation3], %s301
        %s303 = sand.u32 %s34, 1
        %s304 = scalar_lea.vmem [#allocation2], %s303
        %p305 = pneg %p47
        %p306 = pneg %p44
        %s307 = sand.u32 %s26, 1
        %s308 = scalar_lea.sflag [#allocation6], %s307
        %s309 = sand.u32 %s60, 1
        %s310 = scalar_lea.vmem [#allocation5], %s309
        %p311 = pneg %p73
        %p312 = pneg %p70
        %s313 = sand.u32 %s26, 1
        %s314 = scalar_lea.sflag [#allocation6], %s313
        %s315 = sand.u32 %s86, 1
        %s316 = smul.addr %s315, 8
        %s317 = scalar_lea.vmem [#allocation7], %s316
        %p318 = pneg %p99
        %p319 = pneg %p96
        %p320 = pneg %p120
        %p321 = pneg %p117
        %p322 = pneg %p141
        %p323 = pneg %p138
        %p324 = pneg %p167
        %p325 = pneg %p164
        %s326 = sand.u32 %s154, 1
        %s327 = scalar_lea.sflag [#allocation4], %s326
        %s328 = sand.u32 %s154, 1
        %s329 = smul.addr %s328, 8
        %s330 = scalar_lea.vmem [#allocation11], %s329
        %v331 = vld [vmem:[%s288] sm:$0xff]
        %v333 = vcombine.high %v331, %v331
        %vm335 = vcmask 1043456
        %v336 = vsel %vm335, %v331, 0.0
        %v337 = vsel %vm335, %v333, 0.0
        %v338 = vadd.f32 %v336, %v337
        %339 = vadd.xlane.f32.xlu0 %v338
        %v340 = vpop.xlane.xlu0 %339
        %v341 = vmul.f32 %v331, %v331
        %v343 = vcombine.high %v341, %v341
        %v345 = vsel %vm335, %v341, 0.0
        %v346 = vsel %vm335, %v343, 0.0
        %v347 = vadd.f32 %v345, %v346
        %348 = vadd.xlane.f32.xlu0 %v347
        %v349 = vpop.xlane.xlu0 %348
        %v350 = vlaneseq
        %v351 = vshrl.u32 %v350, 7
        %vm352 = vcmask 1041408
        %v353 = vsel %vm352, %v340, 0.0
        %v354 = vrot.slane %v353, 4
        %v355 = vadd.f32 %v353, %v354
        %v356 = vrot.slane %v355, 2
        %v357 = vadd.f32 %v355, %v356
        %v358 = vrot.slane %v357, 1
        %v359 = vadd.f32 %v357, %v358
        %v360 = vsel %vm352, %v349, 0.0
        %v361 = vrot.slane %v360, 4
        %v362 = vadd.f32 %v360, %v361
        %v363 = vrot.slane %v362, 2
        %v364 = vadd.f32 %v362, %v363
        %v365 = vrot.slane %v364, 1
        %v366 = vadd.f32 %v364, %v365
        %v367 = vmul.f32 %v359, 0.001953125
        %v368 = vmul.f32 %v366, 0.001953125
        %v369 = vmul.f32 %v367, %v367
        %v370 = vsub.f32 %v368, %v369
        %v371 = vadd.f32 %v370, 1e-05
        %v372 = vrsqrt.pop %v371
        %vm373 = vcmp.ge.s32.totalorder %v351, 0
        %vm374 = vcmp.lt.s32.totalorder %v351, 2
        %vm375 = vmand %vm373, %vm374
        %v376 = vsel %vm375, %v367, 0.0
        %v377 = vsel %vm375, %v372, 0.0
        %v379 = vrot.slane %v340, 2
        %v381 = vsel %vm352, %v379, 0.0
        %v382 = vrot.slane %v381, 4
        %v383 = vadd.f32 %v381, %v382
        %v384 = vrot.slane %v383, 2
        %v385 = vadd.f32 %v383, %v384
        %v386 = vrot.slane %v385, 1
        %v387 = vadd.f32 %v385, %v386
        %v389 = vrot.slane %v349, 2
        %v391 = vsel %vm352, %v389, 0.0
        %v392 = vrot.slane %v391, 4
        %v393 = vadd.f32 %v391, %v392
        %v394 = vrot.slane %v393, 2
        %v395 = vadd.f32 %v393, %v394
        %v396 = vrot.slane %v395, 1
        %v397 = vadd.f32 %v395, %v396
        %v398 = vmul.f32 %v387, 0.001953125
        %v399 = vmul.f32 %v397, 0.001953125
        %v400 = vmul.f32 %v398, %v398
        %v401 = vsub.f32 %v399, %v400
        %v402 = vadd.f32 %v401, 1e-05
        %v403 = vrsqrt.pop %v402
        %vm404 = vcmp.ge.s32.totalorder %v351, 2
        %vm405 = vcmp.lt.s32.totalorder %v351, 4
        %vm406 = vmand %vm404, %vm405
        %v407 = vsel %vm406, %v398, %v376
        %v408 = vsel %vm406, %v403, %v377
        %v409 = vld [vmem:[%s271] sm:$0x1]
        %v410 = vld [vmem:[%s279] sm:$0x1]
        %v411 = vld [vmem:[#allocation8] sm:$0xf]
        %v412 = vld [vmem:[#allocation10] sm:$0xf]
        %v413 = vmul.f32 %v411, %v408
        %v415 = vlaneseq
        %v416 = vshrl.u32 %v415, 7
        %v417 = vsub.s32 0, %v416
        %v418 = vrot.slane %v409, %v417
        %v420 = vmul.f32 %v413, %v418
        %v421 = vmul.f32 %v407, %v413
        %v422 = vsub.f32 %v412, %v421
        %v423 = vmul.f32 %v422, %v418
        %v425 = vlaneseq
        %v426 = vshrl.u32 %v425, 7
        %v427 = vsub.s32 0, %v426
        %v428 = vrot.slane %v410, %v427
        %v430 = vadd.f32 %v423, %v428
        %432 = vset.pattern.permute.xlu0 0
        %433 = vperm.xlu0 %432, %v420
        %v434 = vpop.permute.xlu0 %433
        %v436 = vunpack.c.l.s4 839922192
        %v437 = vunpack.c.0.s8 %v436
        %v438 = vlaneseq
        %v439 = vshrl.u32 %v438, 7
        %v440 = vsub.s32 %v437, %v439
        %v441 = vrot.slane %v434, %v440
        %v443 = vmul.f32 %v331, %v441
        %445 = vset.pattern.permute.xlu0 0
        %446 = vperm.xlu0 %445, %v430
        %v447 = vpop.permute.xlu0 %446
        %v449 = vunpack.c.l.s4 839922192
        %v450 = vunpack.c.0.s8 %v449
        %v451 = vlaneseq
        %v452 = vshrl.u32 %v451, 7
        %v453 = vsub.s32 %v450, %v452
        %v454 = vrot.slane %v447, %v453
        %v456 = vadd.f32 %v443, %v454
        %457 = vst [vmem:[%s330] sm:$0xff] %v456
        %s458 = sand.u32 %s154, 1
        %s459 = scalar_lea.sflag [#allocation4], %s458
        %s460 = sand.u32 %s154, 1
        %s461 = smul.addr %s460, 8
        %s462 = scalar_lea.vmem [#allocation11], %s461
        // Predicated region
        $region61: #{tpu_custom_call.1} parent=39 // pred_check
          %p463 = pneg %p164
        $region62: #{tpu_custom_call.1} parent=39 // pred_check_branch
          %465 = sbr.rel (%p463) target = $region64
        $region63: #{tpu_custom_call.1} parent=39 // pred_region
          %s467 = ssub.s32 128, 128
          %468 = vsyncadd %s459, %s467
          %s469 = smul.addr %s26, 2
          %s470 = smul.addr %s469, 64
          %s471 = scalar_lea.hbm %s5, %s470
          %s473 = sshll.u32 %s462, 4
          %s474 = int_to_ptr.vmem [resolvable:$true] %s473
          %476 = dma.vmem_to_hbm [thread:$0]  %s474, 128, %s471, %s459
        $region64: #{tpu_custom_call.1} parent=39 // pred_fallthru
          _
      $region40: #{tpu_custom_call.1} parent=5 // pred_fallthru
        _
      %p477 = scmp.le.s32.totalorder 2, %s21
      // Predicated region
      $region65: #{tpu_custom_call.1} parent=5 // pred_check
        %p478 = pneg %p477
      $region66: #{tpu_custom_call.1} parent=5 // pred_check_branch
        %480 = sbr.rel (%p478) target = $region68
      $region67: #{tpu_custom_call.1} parent=5 // pred_region
        %s481 = ssub.s32 %s21, 2
        // Predicated region
        $region69: #{tpu_custom_call.1} parent=67 // pred_check
          %p482 = pneg %p170
        $region70: #{tpu_custom_call.1} parent=67 // pred_check_branch
          %484 = sbr.rel (%p482) target = $region72
        $region71: #{tpu_custom_call.1} parent=67 // pred_region
          %s485 = sand.u32 %s155, 1
          %s486 = scalar_lea.sflag [#allocation4], %s485
          %s487 = sand.u32 %s155, 1
          %s488 = smul.addr %s487, 8
          %s489 = scalar_lea.vmem [#allocation11], %s488
          %490 = dma.done %s486, 128
        $region72: #{tpu_custom_call.1} parent=67 // pred_fallthru
          _
      $region68: #{tpu_custom_call.1} parent=5 // pred_fallthru
        _
    $region6: #{tpu_custom_call.1} parent=1 // loop_footer
      %s25 = sadd.s32 1, %s21
    $region7: #{tpu_custom_call.1} parent=1 // loop_footer_branch
      %20 = sbr.rel target = $region3
    $region8: #{tpu_custom_call.1} parent=1 // loop_exit
      _
    %491 = vsyncpa [#allocation3], 1
    %s492 = scalar_lea.sflag [#allocation3], 1
    %493 = vsyncpa %s492, 1
    %494 = vsyncpa [#allocation6], 1
    %s495 = scalar_lea.sflag [#allocation6], 1
    %496 = vsyncpa %s495, 1
    %497 = vsyncpa [#allocation9], 1
    %498 = vsyncpa [#allocation4], 1
    %s499 = scalar_lea.sflag [#allocation4], 1
    %500 = vsyncpa %s499, 1

</llo_original>
